<compile_context>
chip_gen: v7x
topology: tpu7x:2x2x1
jax: 0.10.0
libtpu: 0.0.40
codegen_flags: <defaults>
</compile_context>

<pallas_src>
import functools

import jax
import jax.numpy as jnp
from jax.experimental import pallas as pl
from jax.experimental.pallas import tpu as pltpu

_LANE = 128
_SUBLANE = 8


def _round_up(n, m):
    return (n + m - 1) // m * m


def _bias_head_kernel(x_ref, w_ref, b_ref, o_ref):
    # x_ref: [TB, H]   w_ref: [H, Lp]   b_ref: [1, Lp]   o_ref: [TB, Lp]
    x = x_ref[...]
    if x.dtype != w_ref.dtype:
        # In-kernel cast on the streamed block (no extra HBM pass).
        x = x.astype(w_ref.dtype)
    acc = jnp.dot(x, w_ref[...], preferred_element_type=jnp.float32)
    o_ref[...] = (acc + b_ref[...].astype(jnp.float32)).astype(o_ref.dtype)


def prepare_classifier_params(weight, bias, *, compute_dtype=jnp.float32):
    """One-time (model-load) prep.

    weight: [L, H] (PyTorch nn.Linear layout), bias: [L].
    Returns (w_padded [H, Lp], b_padded [1, Lp]) with Lp = multiple of 128.
    Amortized to zero cost per forward call.  H is NOT padded: the kernel's
    blocks span the full H axis, and real KoELECTRA H (768/1024) is already
    lane-dense.
    """
    L, H = weight.shape
    Lp = _round_up(L, _LANE)
    w_padded = jnp.zeros((H, Lp), dtype=compute_dtype)
    w_padded = w_padded.at[:, :L].set(weight.T.astype(compute_dtype))
    b_padded = jnp.zeros((1, Lp), dtype=jnp.float32)
    b_padded = b_padded.at[0, :L].set(bias.astype(jnp.float32))
    return w_padded, b_padded


def bias_classification_head(x, w_padded, b_padded, *,
                             train=False, dropout_prob=0.1,
                             batch_tile=1024, out_dtype=None,
                             xla_fallback_below=64):
    """Eval-mode forward of Dropout -> Linear(hidden_size, num_labels).

    x: [B, H] activations (pass them in bf16 to halve the dominant HBM read on
    v6e/v7x; accumulation stays f32 either way).
    Returns lane-dense logits [B, Lp=round_up(num_labels,128)]; columns beyond
    the real label count are exactly bias=0-padded and should be masked/ignored
    by the consumer (softmax/argmax/loss).
    """
    if train:
        # TODO(synk): training-mode dropout (pltpu.prng_seed / prng_random_bits
        # mask) not implemented; refuse rather than silently return eval output.
        raise NotImplementedError("train-mode dropout not implemented (eval only)")
    del dropout_prob

    B, H = x.shape
    Hw, Lp = w_padded.shape
    assert Hw == H, f"weight prepared for H={Hw}, got activations with H={H}"
    if out_dtype is None:
        out_dtype = x.dtype

    # Small-batch fallback: XLA's fused dot beats pallas_call fixed overhead.
    if B < xla_fallback_below:
        acc = jnp.dot(x.astype(w_padded.dtype), w_padded,
                      preferred_element_type=jnp.float32)
        return (acc + b_padded.astype(jnp.float32)).astype(out_dtype)

    # Batch tile: multiple of 8 sublanes; aim for >= 2 grid steps so both v7x
    # TensorCores get work, capped at batch_tile rows (VMEM stays a few MiB).
    TB = min(batch_tile, max(_SUBLANE, _round_up(pl.cdiv(B, 2), _SUBLANE)))
    grid = (pl.cdiv(B, TB),)

    x_bytes = jnp.dtype(x.dtype).itemsize
    w_bytes = jnp.dtype(w_padded.dtype).itemsize
    out_bytes = jnp.dtype(out_dtype).itemsize
    cost = pl.CostEstimate(
        flops=2 * B * H * Lp,
        transcendentals=0,
        bytes_accessed=B * H * x_bytes + H * Lp * w_bytes + Lp * 4
        + B * Lp * out_bytes,
    )

    return pl.pallas_call(
        _bias_head_kernel,
        out_shape=jax.ShapeDtypeStruct((B, Lp), out_dtype),
        grid=grid,
        in_specs=[
            pl.BlockSpec((TB, H), lambda i: (i, 0)),   # stream batch tiles
            pl.BlockSpec((H, Lp), lambda i: (0, 0)),   # weight resident in VMEM
            pl.BlockSpec((1, Lp), lambda i: (0, 0)),   # bias resident in VMEM
        ],
        out_specs=pl.BlockSpec((TB, Lp), lambda i: (i, 0)),
        compiler_params=pltpu.CompilerParams(
            dimension_semantics=("parallel",),
        ),
        cost_estimate=cost,
    )(x, w_padded, b_padded)


def reference(x, weight, bias):
    return x @ weight.T + bias[None, :]


if __name__ == "__main__":
    key = jax.random.PRNGKey(0)
    kx, kw, kb, kx2 = jax.random.split(key, 4)

    hidden = 128            # config.hidden_size (small lane-dense synthetic value)
    num_bias_labels = 5

    # Deterministic init mimicking nn.Linear default (uniform in +-1/sqrt(hidden))
    bound = 1.0 / float(jnp.sqrt(hidden))
    weight = jax.random.uniform(kw, (num_bias_labels, hidden),
                                minval=-bound, maxval=bound, dtype=jnp.float32)
    bias = jax.random.uniform(kb, (num_bias_labels,),
                              minval=-bound, maxval=bound, dtype=jnp.float32)

    # One-time weight/bias prep (model-load time): transpose + pad labels to a
    # lane-dense Lp=128 layout.  Per-forward calls reuse these arrays directly.
    w_padded, b_padded = prepare_classifier_params(weight, bias)

    fwd = functools.partial(bias_classification_head,
                            w_padded=w_padded, b_padded=b_padded)

    # --- Pallas path: batch large enough for a 2-step grid with a ragged tail.
    batch = 100
    x = jax.random.normal(kx, (batch, hidden), dtype=jnp.float32)
    out = jax.block_until_ready(fwd(x))
    assert out.shape == (batch, 128)
    ref = reference(x, weight, bias)
    assert jnp.allclose(out[:, :num_bias_labels], ref, atol=1e-4, rtol=1e-4), \
        "pallas path mismatch vs reference"
    # Padded label columns are exactly zero (zero weight cols, zero bias).
    assert jnp.all(out[:, num_bias_labels:] == 0.0)

    # --- Small-batch fallback path (plain XLA dot), semantics identical.
    batch_small = 8
    x2 = jax.random.normal(kx2, (batch_small, hidden), dtype=jnp.float32)
    out2 = jax.block_until_ready(fwd(x2))
    ref2 = reference(x2, weight, bias)
    assert out2.shape == (batch_small, 128)
    assert jnp.allclose(out2[:, :num_bias_labels], ref2, atol=1e-4, rtol=1e-4), \
        "fallback path mismatch vs reference"

    print("KERNEL_OK")
</pallas_src>

<mosaic_0001>
module attributes {stable_mosaic.version = 11 : i64} {
  func.func @_bias_head_kernel(%arg0: i32, %arg1: memref<56x128xf32, #tpu.memory_space<vmem>>, %arg2: memref<128x128xf32, #tpu.memory_space<vmem>>, %arg3: memref<1x128xf32, #tpu.memory_space<vmem>>, %arg4: memref<56x128xf32, #tpu.memory_space<vmem>>) attributes {dimension_semantics = [#tpu.dimension_semantics<parallel>], iteration_bounds = array<i64: 2>, scalar_prefetch = 0 : i64, scratch_operands = 0 : i64, tpu.core_type = #tpu.core_type<tc>, window_params = [{transform_indices = @transform_0, window_bounds = array<i64: 56, 128>}, {pipeline_mode = #tpu.pipeline_mode<synchronous>, transform_indices = @transform_1, window_bounds = array<i64: 128, 128>}, {pipeline_mode = #tpu.pipeline_mode<synchronous>, transform_indices = @transform_2, window_bounds = array<i64: 1, 128>}, {transform_indices = @transform_3, window_bounds = array<i64: 56, 128>}]} {
    %c0 = arith.constant 0 : index
    %c0_0 = arith.constant 0 : index
    %0 = vector.load %arg1[%c0, %c0_0] : memref<56x128xf32, #tpu.memory_space<vmem>>, vector<56x128xf32>
    %c0_1 = arith.constant 0 : index
    %c0_2 = arith.constant 0 : index
    %1 = vector.load %arg2[%c0_1, %c0_2] : memref<128x128xf32, #tpu.memory_space<vmem>>, vector<128x128xf32>
    %cst = arith.constant dense<0.000000e+00> : vector<56x128xf32>
    %2 = tpu.matmul %0, %1, %cst {dimension_numbers = #tpu.dot_dimension_numbers<[1], [0], [0], [1], [0, 0, 1, 1], [], []>} : vector<56x128xf32>, vector<128x128xf32>, vector<56x128xf32> -> vector<56x128xf32>
    %c0_3 = arith.constant 0 : index
    %c0_4 = arith.constant 0 : index
    %3 = vector.load %arg3[%c0_3, %c0_4] : memref<1x128xf32, #tpu.memory_space<vmem>>, vector<1x128xf32>
    %4 = vector.broadcast %3 : vector<1x128xf32> to vector<56x128xf32>
    %5 = arith.addf %2, %4 : vector<56x128xf32>
    %c0_5 = arith.constant 0 : index
    %c0_6 = arith.constant 0 : index
    %6 = vector.load %arg4[%c0_5, %c0_6] : memref<56x128xf32, #tpu.memory_space<vmem>>, vector<56x128xf32>
    tpu.vector_store %arg4[%c0_5, %c0_6], %5 {strides = array<i32>} : memref<56x128xf32, #tpu.memory_space<vmem>>, vector<56x128xf32>,
    return
  }
  func.func @transform_0(%arg0: i32) -> (i32, i32) {
    %c0_i32 = arith.constant 0 : i32
    %c0_i32_0 = arith.constant 0 : i32
    return %arg0, %c0_i32 : i32, i32
  }
  func.func @transform_1(%arg0: i32) -> (i32, i32) {
    %c0_i32 = arith.constant 0 : i32
    %c0_i32_0 = arith.constant 0 : i32
    %c0_i32_1 = arith.constant 0 : i32
    return %c0_i32, %c0_i32_0 : i32, i32
  }
  func.func @transform_2(%arg0: i32) -> (i32, i32) {
    %c0_i32 = arith.constant 0 : i32
    %c0_i32_0 = arith.constant 0 : i32
    %c0_i32_1 = arith.constant 0 : i32
    return %c0_i32, %c0_i32_0 : i32, i32
  }
  func.func @transform_3(%arg0: i32) -> (i32, i32) {
    %c0_i32 = arith.constant 0 : i32
    %c0_i32_0 = arith.constant 0 : i32
    return %arg0, %c0_i32 : i32, i32
  }
}

</mosaic_0001>

<llo_original>
// kernel: tpu_custom_call.1
$region0: #{tpu_custom_call.1}
  #allocation0 [shape = 'u32[]', space=smem, size = 0x4, offset = 0x4, fixed_abs, tag = 'smem constant byte address 0x4 - core index']
  #allocation1 [shape = 'u32[144,128]{1,0:T(1,128)}', space=vmem, size = 0x12000, scoped, tag = 'internal scratch']
  %s0 = inlined_call_operand.hbm [shape: f32[100,128], index: 0, kind: input, shape index: {}]
  %s1 = inlined_call_operand.hbm [shape: f32[128,128], index: 1, kind: input, shape index: {}]
  %s2 = inlined_call_operand.vmem [shape: f32[1,128], index: 2, kind: input, shape index: {}]
  %s3 = inlined_call_operand.hbm [shape: f32[100,128], index: 3, kind: output, shape index: {}]
  %s4 = sld [smem:[#allocation0]]
  $region53: #{tpu_custom_call.1} parent=0
    _
  %s6 = ssub.s32 1, %s4
  %s7 = scalar_select 0, %s6, %s4
  $region1: #{tpu_custom_call.1} parent=0
    #allocation2 [shape = 'u8[57344]{0}', space=vmem, size = 0xe000, scoped, tag = 'input window, operand 0']
    #allocation3 [shape = 's32[2]{0}', space=sflag, size = 0x8, scoped, tag = 'scoped memory for tpu_custom_call.1']
    #allocation4 [shape = 's32[2]{0}', space=sflag, size = 0x8, scoped, tag = 'scoped memory for tpu_custom_call.1']
    #allocation5 [shape = 'u8[65536]{0}', space=vmem, size = 0x10000, scoped, tag = 'input window, operand 1, single buffered']
    #allocation6 [shape = 's32[1]{0}', space=sflag, size = 0x4, scoped, tag = 'scoped memory for tpu_custom_call.1']
    #allocation7 [shape = 'u8[57344]{0}', space=vmem, size = 0xe000, scoped, tag = 'output window, operand 0']
    %8 = vsyncpa [#allocation3], 0
    %s9 = scalar_lea.sflag [#allocation3], 1
    %10 = vsyncpa %s9, 0
    %11 = vsyncpa [#allocation6], 0
    %12 = vsyncpa [#allocation4], 0
    %s13 = scalar_lea.sflag [#allocation4], 1
    %14 = vsyncpa %s13, 0
    loop: start=0, step=1, limit=4
    $region2: #{tpu_custom_call.1} parent=1 // loop_pre_header
      _
    $region3: #{tpu_custom_call.1} parent=1 // loop_header
      %s16 = sphi 0, %s20
      %p17 = scmp.ge.s32.totalorder %s16, 4
      %s26 = sphi 0, %s28
      %s29 = sphi 0, %s26
      %s30 = sphi 0, %s29
      %s46 = sphi 0, %s30
      %s50 = sphi 0, %s50
      %s52 = sphi 0, %s50
      %s53 = sphi 0, %s52
      %s67 = sphi 0, %s53
      %s71 = sphi 0, %s71
      %s73 = sphi 0, %s71
      %s74 = sphi 0, %s73
      %s88 = sphi 0, %s74
      %s94 = sphi 0, %s96
      %s97 = sphi 0, %s94
      %s98 = sphi 0, %s97
      %s114 = sphi 0, %s98
    $region4: #{tpu_custom_call.1} parent=1 // loop_header_branch
      %19 = sbr.rel (%p17) target = $region8
    $region5: #{tpu_custom_call.1} parent=1 // loop_body
      %s21 = ssub.s32 %s16, 1
      %s22 = ssub.s32 %s16, 2
      %s23 = sadd.s32 %s16, 1
      %s24 = ssub.s32 %s16, %s23
      %p25 = scmp.eq.s32.totalorder %s24, 0
      %s27 = sadd.s32 %s26, 1
      %s28 = scalar_select %p25, %s26, %s27
      %p31 = pneg %p25
      %p32 = scmp.eq.s32.totalorder %s16, 1
      %p33 = por %p31, %p32
      %p34 = scmp.ne.s32.totalorder %s26, %s29
      %p35 = scmp.eq.s32.totalorder %s16, 0
      %p36 = por %p34, %p35
      %p37 = scmp.ne.s32.totalorder %s26, %s29
      %p38 = scmp.eq.s32.totalorder %s21, 1
      %p39 = por %p37, %p38
      %p40 = scmp.ne.s32.totalorder %s29, %s30
      %p41 = scmp.eq.s32.totalorder %s21, 0
      %p42 = por %p40, %p41
      %p43 = scmp.ne.s32.totalorder %s29, %s30
      %p44 = scmp.eq.s32.totalorder %s22, 1
      %p45 = por %p43, %p44
      %p47 = scmp.ne.s32.totalorder %s30, %s46
      %p48 = scmp.eq.s32.totalorder %s22, 0
      %p49 = por %p47, %p48
      %s51 = sadd.s32 %s50, 1
      %p54 = scmp.eq.s32.totalorder %s16, 1
      %p55 = scmp.ne.s32.totalorder %s50, %s52
      %p56 = scmp.eq.s32.totalorder %s16, 0
      %p57 = por %p55, %p56
      %p58 = scmp.ne.s32.totalorder %s50, %s52
      %p59 = scmp.eq.s32.totalorder %s21, 1
      %p60 = por %p58, %p59
      %p61 = scmp.ne.s32.totalorder %s52, %s53
      %p62 = scmp.eq.s32.totalorder %s21, 0
      %p63 = por %p61, %p62
      %p64 = scmp.ne.s32.totalorder %s52, %s53
      %p65 = scmp.eq.s32.totalorder %s22, 1
      %p66 = por %p64, %p65
      %p68 = scmp.ne.s32.totalorder %s53, %s67
      %p69 = scmp.eq.s32.totalorder %s22, 0
      %p70 = por %p68, %p69
      %s72 = sadd.s32 %s71, 1
      %p75 = scmp.eq.s32.totalorder %s16, 1
      %p76 = scmp.ne.s32.totalorder %s71, %s73
      %p77 = scmp.eq.s32.totalorder %s16, 0
      %p78 = por %p76, %p77
      %p79 = scmp.ne.s32.totalorder %s71, %s73
      %p80 = scmp.eq.s32.totalorder %s21, 1
      %p81 = por %p79, %p80
      %p82 = scmp.ne.s32.totalorder %s73, %s74
      %p83 = scmp.eq.s32.totalorder %s21, 0
      %p84 = por %p82, %p83
      %p85 = scmp.ne.s32.totalorder %s73, %s74
      %p86 = scmp.eq.s32.totalorder %s22, 1
      %p87 = por %p85, %p86
      %p89 = scmp.ne.s32.totalorder %s74, %s88
      %p90 = scmp.eq.s32.totalorder %s22, 0
      %p91 = por %p89, %p90
      %s92 = ssub.s32 %s16, %s23
      %p93 = scmp.eq.s32.totalorder %s92, 0
      %s95 = sadd.s32 %s94, 1
      %s96 = scalar_select %p93, %s94, %s95
      %p99 = pneg %p93
      %p100 = scmp.eq.s32.totalorder %s16, 1
      %p101 = por %p99, %p100
      %p102 = scmp.ne.s32.totalorder %s94, %s97
      %p103 = scmp.eq.s32.totalorder %s16, 0
      %p104 = por %p102, %p103
      %p105 = scmp.ne.s32.totalorder %s94, %s97
      %p106 = scmp.eq.s32.totalorder %s21, 1
      %p107 = por %p105, %p106
      %p108 = scmp.ne.s32.totalorder %s97, %s98
      %p109 = scmp.eq.s32.totalorder %s21, 0
      %p110 = por %p108, %p109
      %p111 = scmp.ne.s32.totalorder %s97, %s98
      %p112 = scmp.eq.s32.totalorder %s22, 1
      %p113 = por %p111, %p112
      %p115 = scmp.ne.s32.totalorder %s98, %s114
      %p116 = scmp.eq.s32.totalorder %s22, 0
      %p117 = por %p115, %p116
      %p118 = scmp.le.s32.totalorder 1, %s16
      %p119 = scmp.lt.s32.totalorder %s16, 3
      %p120 = pnand %p118, %p119
      %p121 = pneg %p120
      // Predicated region
      $region9: #{tpu_custom_call.1} parent=5 // pred_check
        _
      $region10: #{tpu_custom_call.1} parent=5 // pred_check_branch
        %123 = sbr.rel (%p120) target = $region12
      $region11: #{tpu_custom_call.1} parent=5 // pred_region
        %s124 = ssub.s32 %s16, 1
        // Predicated region
        $region13: #{tpu_custom_call.1} parent=11 // pred_check
          %p125 = pneg %p63
        $region14: #{tpu_custom_call.1} parent=11 // pred_check_branch
          %127 = sbr.rel (%p125) target = $region16
        $region15: #{tpu_custom_call.1} parent=11 // pred_region
          %s129 = ssub.s32 2048, 2048
          %130 = vsyncadd [#allocation6], %s129
          %s131 = sshll.u32 [#allocation5], 4
          %s132 = int_to_ptr.vmem [resolvable:$true] %s131
          %137 = dma.hbm_to_vmem [thread:$0]  %s1, 2048, %s132, [#allocation6], 128, 128, 8
        $region16: #{tpu_custom_call.1} parent=11 // pred_fallthru
          _
        // Predicated region
        $region17: #{tpu_custom_call.1} parent=11 // pred_check
          %p138 = pneg %p84
        $region18: #{tpu_custom_call.1} parent=11 // pred_check_branch
          %140 = sbr.rel (%p138) target = $region20
        $region19: #{tpu_custom_call.1} parent=11 // pred_region
          _
        $region20: #{tpu_custom_call.1} parent=11 // pred_fallthru
          _
      $region12: #{tpu_custom_call.1} parent=5 // pred_fallthru
        _
      %p141 = scmp.lt.s32.totalorder %s16, 2
      // Predicated region
      $region21: #{tpu_custom_call.1} parent=5 // pred_check
        %p142 = pneg %p141
      $region22: #{tpu_custom_call.1} parent=5 // pred_check_branch
        %144 = sbr.rel (%p142) target = $region24
      $region23: #{tpu_custom_call.1} parent=5 // pred_region
        // Predicated region
        $region25: #{tpu_custom_call.1} parent=23 // pred_check
          %p145 = pneg %p36
        $region26: #{tpu_custom_call.1} parent=23 // pred_check_branch
          %147 = sbr.rel (%p145) target = $region28
        $region27: #{tpu_custom_call.1} parent=23 // pred_region
          %s148 = sand.u32 %s26, 1
          %s149 = scalar_lea.sflag [#allocation3], %s148
          %s150 = sand.u32 %s26, 1
          %s151 = smul.addr %s150, 56
          %s152 = scalar_lea.vmem [#allocation2], %s151
          %s153 = smul.u32 7, %s16
          %s154 = ssub.s32 13, %s153
          %p155 = scmp.lt.s32.totalorder %s154, 7
          %s156 = scalar_select %p155, %s154, 7
          %s157 = smul.u32 128, %s156
          %s159 = ssub.s32 896, %s157
          %160 = vsyncadd %s149, %s159
          %p161 = scmp.ne.s32.totalorder 0, %s157
          %s162 = smul.addr %s153, 128
          %s163 = scalar_lea.hbm %s0, %s162
          %s164 = smul.u32 8, %s156
          %s165 = sshll.u32 %s152, 4
          %s166 = int_to_ptr.vmem [resolvable:$true] %s165
          %s167 = sshll.u32 %s164, 4
          %171 = dma.hbm_to_vmem [thread:$0]  (%p161), %s163, %s167, %s166, %s149, 128, 128, 8
        $region28: #{tpu_custom_call.1} parent=23 // pred_fallthru
          _
      $region24: #{tpu_custom_call.1} parent=5 // pred_fallthru
        _
      %p172 = scmp.le.s32.totalorder 1, %s16
      %p173 = scmp.lt.s32.totalorder %s16, 3
      %p174 = pnand %p172, %p173
      %p175 = pneg %p174
      // Predicated region
      $region29: #{tpu_custom_call.1} parent=5 // pred_check
        _
      $region30: #{tpu_custom_call.1} parent=5 // pred_check_branch
        %177 = sbr.rel (%p174) target = $region32
      $region31: #{tpu_custom_call.1} parent=5 // pred_region
        %s178 = ssub.s32 %s16, 1
        %s179 = sand.u32 %s29, 1
        %s180 = scalar_lea.sflag [#allocation3], %s179
        %s181 = sand.u32 %s29, 1
        %s182 = smul.addr %s181, 56
        %s183 = scalar_lea.vmem [#allocation2], %s182
        // Predicated region
        $region33: #{tpu_custom_call.1} parent=31 // pred_check
          %p184 = pneg %p42
        $region34: #{tpu_custom_call.1} parent=31 // pred_check_branch
          %186 = sbr.rel (%p184) target = $region36
        $region35: #{tpu_custom_call.1} parent=31 // pred_region
          %187 = dma.done %s180, 896
        $region36: #{tpu_custom_call.1} parent=31 // pred_fallthru
          _
        // Predicated region
        $region37: #{tpu_custom_call.1} parent=31 // pred_check
          %p188 = pneg %p63
        $region38: #{tpu_custom_call.1} parent=31 // pred_check_branch
          %190 = sbr.rel (%p188) target = $region40
        $region39: #{tpu_custom_call.1} parent=31 // pred_region
          %191 = dma.done [#allocation6], 2048
        $region40: #{tpu_custom_call.1} parent=31 // pred_fallthru
          _
        %s192 = sand.u32 %s29, 1
        %s193 = scalar_lea.sflag [#allocation3], %s192
        %s194 = sand.u32 %s29, 1
        %s195 = smul.addr %s194, 56
        %s196 = scalar_lea.vmem [#allocation2], %s195
        %p197 = pneg %p42
        %p198 = pneg %p39
        %p199 = pneg %p63
        %p200 = pneg %p60
        %p201 = pneg %p84
        %p202 = pneg %p81
        %p203 = pneg %p110
        %p204 = pneg %p107
        %s205 = sand.u32 %s97, 1
        %s206 = scalar_lea.sflag [#allocation4], %s205
        %s207 = sand.u32 %s97, 1
        %s208 = smul.addr %s207, 56
        %s209 = scalar_lea.vmem [#allocation7], %s208
        %s210 = smul.u32 7, %s21
        %s211 = ssub.s32 13, %s210
        %p212 = scmp.lt.s32.totalorder %s211, 7
        %s213 = scalar_select %p212, %s211, 7
        %s214 = smul.u32 128, %s213
        %s215 = smul.u32 7, %s21
        %s216 = ssub.s32 13, %s215
        %p217 = scmp.lt.s32.totalorder %s216, 7
        %s218 = scalar_select %p217, %s216, 7
        %s219 = smul.u32 128, %s218
        %v220 = vld [vmem:[%s183] sm:$0xff]
        %v221 = vld [vmem:[%s183 + $0x8] sm:$0xff]
        %v222 = vld [vmem:[%s183 + $0x10] sm:$0xff]
        %v223 = vld [vmem:[%s183 + $0x18] sm:$0xff]
        %v224 = vld [vmem:[%s183 + $0x20] sm:$0xff]
        %v225 = vld [vmem:[%s183 + $0x28] sm:$0xff]
        %v226 = vld [vmem:[%s183 + $0x30] sm:$0xff]
        %v227 = vld [vmem:[#allocation5] sm:$0xff]
        %v228 = vld [vmem:[#allocation5 + $0x8] sm:$0xff]
        %v229 = vld [vmem:[#allocation5 + $0x10] sm:$0xff]
        %v230 = vld [vmem:[#allocation5 + $0x18] sm:$0xff]
        %v231 = vld [vmem:[#allocation5 + $0x20] sm:$0xff]
        %v232 = vld [vmem:[#allocation5 + $0x28] sm:$0xff]
        %v233 = vld [vmem:[#allocation5 + $0x30] sm:$0xff]
        %v234 = vld [vmem:[#allocation5 + $0x38] sm:$0xff]
        %v235 = vld [vmem:[#allocation5 + $0x40] sm:$0xff]
        %v236 = vld [vmem:[#allocation5 + $0x48] sm:$0xff]
        %v237 = vld [vmem:[#allocation5 + $0x50] sm:$0xff]
        %v238 = vld [vmem:[#allocation5 + $0x58] sm:$0xff]
        %v239 = vld [vmem:[#allocation5 + $0x60] sm:$0xff]
        %v240 = vld [vmem:[#allocation5 + $0x68] sm:$0xff]
        %v241 = vld [vmem:[#allocation5 + $0x70] sm:$0xff]
        %v242 = vld [vmem:[#allocation5 + $0x78] sm:$0xff]
        %v243 = vld [vmem:[%s2] sm:$0x1]
        %v245 = vlaneseq
        %v246 = vshrl.u32 %v245, 7
        %v247 = vsub.s32 0, %v246
        %v248 = vrot.slane %v243, %v247
        %250 = vmatprep.subr.mxu0 0.0
        %251 = vmatpush1.msra.mxu0 %v227
        %252 = vmatprep.subr.mxu0 0.0
        %253 = vmatpush1.msra.mxu0 %v228
        %254 = vmatprep.subr.mxu0 0.0
        %255 = vmatpush1.msra.mxu0 %v229
        %256 = vmatprep.subr.mxu0 0.0
        %257 = vmatpush1.msra.mxu0 %v230
        %258 = vmatprep.subr.mxu0 0.0
        %259 = vmatpush1.msra.mxu0 %v231
        %260 = vmatprep.subr.mxu0 0.0
        %261 = vmatpush1.msra.mxu0 %v232
        %262 = vmatprep.subr.mxu0 0.0
        %263 = vmatpush1.msra.mxu0 %v233
        %264 = vmatprep.subr.mxu0 0.0
        %265 = vmatpush1.msra.mxu0 %v234
        %266 = vmatprep.subr.mxu0 0.0
        %267 = vmatpush1.msra.mxu0 %v235
        %268 = vmatprep.subr.mxu0 0.0
        %269 = vmatpush1.msra.mxu0 %v236
        %270 = vmatprep.subr.mxu0 0.0
        %271 = vmatpush1.msra.mxu0 %v237
        %272 = vmatprep.subr.mxu0 0.0
        %273 = vmatpush1.msra.mxu0 %v238
        %274 = vmatprep.subr.mxu0 0.0
        %275 = vmatpush1.msra.mxu0 %v239
        %276 = vmatprep.subr.mxu0 0.0
        %277 = vmatpush1.msra.mxu0 %v240
        %278 = vmatprep.subr.mxu0 0.0
        %279 = vmatpush1.msra.mxu0 %v241
        %280 = vmatprep.subr.mxu0 0.0
        %281 = vmatpush1.msra.mxu0 %v242
        %282 = vmatprep.subr.mxu0 0.0
        %283 = vmatpush1.msra.mxu0 0.0
        %284 = vmatprep.subr.mxu0 0.0
        %285 = vmatpush1.msra.mxu0 0.0
        %286 = vmatprep.subr.mxu0 0.0
        %287 = vmatpush1.msra.mxu0 0.0
        %288 = vmatprep.subr.mxu0 0.0
        %289 = vmatpush1.msra.mxu0 0.0
        %290 = vmatprep.subr.mxu0 0.0
        %291 = vmatpush1.msra.mxu0 0.0
        %292 = vmatprep.subr.mxu0 0.0
        %293 = vmatpush1.msra.mxu0 0.0
        %294 = vmatprep.subr.mxu0 0.0
        %295 = vmatpush1.msra.mxu0 0.0
        %296 = vmatprep.subr.mxu0 0.0
        %297 = vmatpush1.msra.mxu0 0.0
        %298 = vmatprep.subr.mxu0 0.0
        %299 = vmatpush1.msra.mxu0 0.0
        %300 = vmatprep.subr.mxu0 0.0
        %301 = vmatpush1.msra.mxu0 0.0
        %302 = vmatprep.subr.mxu0 0.0
        %303 = vmatpush1.msra.mxu0 0.0
        %304 = vmatprep.subr.mxu0 0.0
        %305 = vmatpush1.msra.mxu0 0.0
        %306 = vmatprep.subr.mxu0 0.0
        %307 = vmatpush1.msra.mxu0 0.0
        %308 = vmatprep.subr.mxu0 0.0
        %309 = vmatpush1.msra.mxu0 0.0
        %310 = vmatprep.subr.mxu0 0.0
        %311 = vmatpush1.msra.mxu0 0.0
        %312 = vmatprep.subr.mxu0 0.0
        %313 = vmatpush1.msra.mxu0 0.0
        %314 = vmatprep.mubr.f32.mxu0 0.0
        %315 = vmatmul.mubr.f32.gmra.mrb[0].mxu0 %v220
        %v316 = vpop.f32.mrb[0].mxu0
        %v317 = vadd.f32 %v248, %v316
        %v318 = vpop.f32.mrb[0].mxu0
        %319 = vmatprep.mubr.f32.mxu0 0.0
        %320 = vmatmul.mubr.f32.gmra.mrb[0].mxu0 %v221
        %v321 = vpop.f32.mrb[0].mxu0
        %v322 = vadd.f32 %v248, %v321
        %v323 = vpop.f32.mrb[0].mxu0
        %324 = vmatprep.mubr.f32.mxu0 0.0
        %325 = vmatmul.mubr.f32.gmra.mrb[0].mxu0 %v222
        %v326 = vpop.f32.mrb[0].mxu0
        %v327 = vadd.f32 %v248, %v326
        %v328 = vpop.f32.mrb[0].mxu0
        %329 = vmatprep.mubr.f32.mxu0 0.0
        %330 = vmatmul.mubr.f32.gmra.mrb[0].mxu0 %v223
        %v331 = vpop.f32.mrb[0].mxu0
        %v332 = vadd.f32 %v248, %v331
        %v333 = vpop.f32.mrb[0].mxu0
        %334 = vmatprep.mubr.f32.mxu0 0.0
        %335 = vmatmul.mubr.f32.gmra.mrb[0].mxu0 %v224
        %v336 = vpop.f32.mrb[0].mxu0
        %v337 = vadd.f32 %v248, %v336
        %v338 = vpop.f32.mrb[0].mxu0
        %339 = vmatprep.mubr.f32.mxu0 0.0
        %340 = vmatmul.mubr.f32.gmra.mrb[0].mxu0 %v225
        %v341 = vpop.f32.mrb[0].mxu0
        %v342 = vadd.f32 %v248, %v341
        %v343 = vpop.f32.mrb[0].mxu0
        %344 = vmatprep.mubr.f32.mxu0 0.0
        %345 = vmatmul.mubr.f32.gmra.mrb[0].mxu0 %v226
        %v346 = vpop.f32.mrb[0].mxu0
        %v347 = vadd.f32 %v248, %v346
        %v348 = vpop.f32.mrb[0].mxu0
        %349 = vdwg.mxu0
        %350 = vst [vmem:[%s209] sm:$0xff] %v317
        %351 = vst [vmem:[%s209 + $0x8] sm:$0xff] %v322
        %352 = vst [vmem:[%s209 + $0x10] sm:$0xff] %v327
        %353 = vst [vmem:[%s209 + $0x18] sm:$0xff] %v332
        %354 = vst [vmem:[%s209 + $0x20] sm:$0xff] %v337
        %355 = vst [vmem:[%s209 + $0x28] sm:$0xff] %v342
        %356 = vst [vmem:[%s209 + $0x30] sm:$0xff] %v347
        %s357 = sand.u32 %s97, 1
        %s358 = scalar_lea.sflag [#allocation4], %s357
        %s359 = sand.u32 %s97, 1
        %s360 = smul.addr %s359, 56
        %s361 = scalar_lea.vmem [#allocation7], %s360
        // Predicated region
        $region41: #{tpu_custom_call.1} parent=31 // pred_check
          %p362 = pneg %p107
        $region42: #{tpu_custom_call.1} parent=31 // pred_check_branch
          %364 = sbr.rel (%p362) target = $region44
        $region43: #{tpu_custom_call.1} parent=31 // pred_region
          %s365 = smul.u32 7, %s21
          %s366 = ssub.s32 13, %s365
          %p367 = scmp.lt.s32.totalorder %s366, 7
          %s368 = scalar_select %p367, %s366, 7
          %s369 = smul.u32 128, %s368
          %s371 = ssub.s32 896, %s369
          %372 = vsyncadd %s358, %s371
          %p373 = scmp.ne.s32.totalorder 0, %s369
          %s374 = smul.addr %s365, 128
          %s375 = scalar_lea.hbm %s3, %s374
          %s376 = smul.u32 8, %s368
          %s377 = sshll.u32 %s361, 4
          %s378 = int_to_ptr.vmem [resolvable:$true] %s377
          %s379 = sshll.u32 %s376, 4
          %383 = dma.vmem_to_hbm [thread:$0]  (%p373), %s378, %s379, %s375, %s358, 128, 128, 8
        $region44: #{tpu_custom_call.1} parent=31 // pred_fallthru
          _
      $region32: #{tpu_custom_call.1} parent=5 // pred_fallthru
        _
      %p384 = scmp.le.s32.totalorder 2, %s16
      // Predicated region
      $region45: #{tpu_custom_call.1} parent=5 // pred_check
        %p385 = pneg %p384
      $region46: #{tpu_custom_call.1} parent=5 // pred_check_branch
        %387 = sbr.rel (%p385) target = $region48
      $region47: #{tpu_custom_call.1} parent=5 // pred_region
        %s388 = ssub.s32 %s16, 2
        // Predicated region
        $region49: #{tpu_custom_call.1} parent=47 // pred_check
          %p389 = pneg %p113
        $region50: #{tpu_custom_call.1} parent=47 // pred_check_branch
          %391 = sbr.rel (%p389) target = $region52
        $region51: #{tpu_custom_call.1} parent=47 // pred_region
          %s392 = sand.u32 %s98, 1
          %s393 = scalar_lea.sflag [#allocation4], %s392
          %s394 = sand.u32 %s98, 1
          %s395 = smul.addr %s394, 56
          %s396 = scalar_lea.vmem [#allocation7], %s395
          %397 = dma.done %s393, 896
        $region52: #{tpu_custom_call.1} parent=47 // pred_fallthru
          _
      $region48: #{tpu_custom_call.1} parent=5 // pred_fallthru
        _
    $region6: #{tpu_custom_call.1} parent=1 // loop_footer
      %s20 = sadd.s32 1, %s16
    $region7: #{tpu_custom_call.1} parent=1 // loop_footer_branch
      %15 = sbr.rel target = $region3
    $region8: #{tpu_custom_call.1} parent=1 // loop_exit
      _
    %398 = vsyncpa [#allocation3], 1
    %s399 = scalar_lea.sflag [#allocation3], 1
    %400 = vsyncpa %s399, 1
    %401 = vsyncpa [#allocation6], 1
    %402 = vsyncpa [#allocation4], 1
    %s403 = scalar_lea.sflag [#allocation4], 1
    %404 = vsyncpa %s403, 1

</llo_original>
